<compile_context>
chip_gen: v5e
topology: v5e:2x2
jax: 0.10.0
libtpu: 0.0.40
codegen_flags: <defaults>
</compile_context>

<pallas_src>
import functools

import jax
import jax.numpy as jnp
from jax.experimental import pallas as pl
from jax.experimental.pallas import tpu as pltpu
from jax.scipy.special import logsumexp as _logsumexp


_NEG_BIG = -1e9   # finite pad: exp() underflows to exactly 0; never -inf (0*inf = NaN).


def _round_up(x, m):
    return (x + m - 1) // m * m


def _pick_lane_tile(n):
    if n >= 1024:
        return 512
    if n >= 256:
        return 256
    return 128


def _vmem_budget_bytes():
    try:
        cap = int(pltpu.get_tpu_info().vmem_capacity_bytes)
    except Exception:
        cap = 64 << 20            # conservative fallback (v7x per-TensorCore VMEM)
    return min(int(cap * 0.8), cap - (8 << 20))


def _use_core_parallel():
    try:
        kind = jax.devices()[0].device_kind.lower()
    except Exception:
        return False
    return ("v7" in kind) and hasattr(pltpu, "CORE_PARALLEL")


def _estimate_step_vmem(tm, tn, num_sample):
    # Double-buffered pipelined blocks: A int8, Bk (<=f32), C int8, S^T i32, lse, logp.
    io = 2 * (tm * tn * (1 + 4 + 1) + num_sample * tn * 4 + 2 * tn * 4)
    # Full-tile in-kernel temporaries: i32 iota, bool mask, f32 select, misc slack.
    tmp = tm * tn * (4 + 1 + 4 + 4)
    return io + tmp + (2 << 20)


def plan_tiling(n, *, row_tile=None, num_sample_hint=16):
    """Pick lane tile (tn), row tile (tm) and padded extents for a given node count."""
    tn = _pick_lane_tile(n)
    n_cols = _round_up(n, tn)
    budget = _vmem_budget_bytes()
    if row_tile is not None:
        tm = _round_up(int(row_tile), 32)
    else:
        n_rows_min = _round_up(n, 32)
        tm = 32
        for cand in (n_rows_min, 8192, 4096, 2048, 1024, 512, 256, 128, 64, 32):
            if cand <= n_rows_min and _estimate_step_vmem(cand, tn, num_sample_hint) <= budget:
                tm = cand
                break
    n_rows = _round_up(n, tm)
    vmem_limit = int(min(budget,
                         max(_estimate_step_vmem(tm, tn, num_sample_hint) + (4 << 20),
                             32 << 20)))
    return {"tn": tn, "tm": tm, "n_rows": n_rows, "n_cols": n_cols,
            "vmem_limit": vmem_limit}


def _graph_editer_kernel(n_actual, a_ref, bk_ref, s_ref, lse_ref, c_ref, logp_ref):
    """One (col tile, row tile): build the edit mask, write C, accumulate log_p."""
    tm, tn = a_ref.shape
    num_sample = s_ref.shape[0]
    col_tile = pl.program_id(0)
    row_tile = pl.program_id(1)

    a = a_ref[...]                               # (tm, tn) int8 {0,1}
    bk = bk_ref[...].astype(jnp.float32)         # (tm, tn) f32 (upcast if bf16 input)

    # M[r, c] = 1 iff global row r in {S[c, 0..num_sample-1]}.
    row_ids = jax.lax.broadcasted_iota(jnp.int32, (tm, tn), 0) + row_tile * tm
    # TODO(synk): on v7x (VALU-bound at 3.2 TB/s HBM) build the mask with int16 iota /
    #             int16 compares to double elements per vreg per compare.
    m = jnp.zeros((tm, tn), jnp.bool_)
    if num_sample <= 8:
        for j in range(num_sample):              # small static edit budget -> unrolled
            sj = s_ref[pl.ds(j, 1), :]           # (1, tn) int32, no reshape/relayout
            m = jnp.logical_or(m, row_ids == sj)
    else:
        def body(j, acc):
            sj = s_ref[pl.ds(j, 1), :]
            return jnp.logical_or(acc, row_ids == sj)
        m = jax.lax.fori_loop(0, num_sample, body, m, unroll=True)

    # C = A + M * (A_c - A)  ==  A XOR M  for A in {0,1}; stored as int8.
    c_ref[...] = jnp.logical_xor(a != 0, m).astype(jnp.int8)

    # Per-column partial of sum_j Bk[S[c,j], c] for this row tile.
    sampled = jnp.sum(jnp.where(m, bk, 0.0), axis=0, keepdims=True)    # (1, tn)

    # Zero out padded lane columns.
    col_ids = jax.lax.broadcasted_iota(jnp.int32, (1, tn), 1) + col_tile * tn
    valid = (col_ids < n_actual).astype(jnp.float32)

    @pl.when(row_tile == 0)
    def _():
        # Column logsumexp is precomputed in the wrapper (shared with sampling).
        logp_ref[...] = -lse_ref[...] * valid

    logp_ref[...] += sampled * valid


def graph_editer_pallas(A_pad, Bk_pad, S_T, lse, n, *, tn, tm, vmem_limit):
    """A_pad (n_rows, n_cols) int8, Bk_pad (n_rows, n_cols) f32/bf16,
    S_T (num_sample, n_cols) int32, lse (1, n_cols) f32.
    Returns (C_pad int8 (n_rows, n_cols), per-column log_p (1, n_cols) f32)."""
    n_rows, n_cols = A_pad.shape
    num_sample = S_T.shape[0]
    num_col_tiles = n_cols // tn
    num_row_tiles = n_rows // tm

    col_sem = pltpu.PARALLEL
    if _use_core_parallel() and num_col_tiles >= 2 and num_col_tiles % 2 == 0:
        col_sem = getattr(pltpu, "CORE_PARALLEL", pltpu.PARALLEL)

    kernel = functools.partial(_graph_editer_kernel, n)
    C_pad, logp_cols = pl.pallas_call(
        kernel,
        grid=(num_col_tiles, num_row_tiles),     # row (reduction) axis last
        in_specs=[
            pl.BlockSpec((tm, tn), lambda i, r: (r, i)),           # A    int8
            pl.BlockSpec((tm, tn), lambda i, r: (r, i)),           # Bk   f32/bf16
            pl.BlockSpec((num_sample, tn), lambda i, r: (0, i)),   # S^T  int32
            pl.BlockSpec((1, tn), lambda i, r: (0, i)),            # lse  f32
        ],
        out_specs=[
            pl.BlockSpec((tm, tn), lambda i, r: (r, i)),           # C    int8
            pl.BlockSpec((1, tn), lambda i, r: (0, i)),            # log_p accumulator
        ],
        out_shape=[
            jax.ShapeDtypeStruct((n_rows, n_cols), jnp.int8),
            jax.ShapeDtypeStruct((1, n_cols), jnp.float32),
        ],
        compiler_params=pltpu.CompilerParams(
            dimension_semantics=(col_sem, pltpu.ARBITRARY),
            vmem_limit_bytes=int(vmem_limit),
        ),
    )(A_pad, Bk_pad, S_T, lse)
    return C_pad, logp_cols


class GraphEditer:
    """JAX/Pallas port of EERMSage.Graph_Editer."""

    def __init__(self, K, n, key, *, row_tile=None, param_dtype=jnp.float32):
        self.n = n
        plan = plan_tiling(n, row_tile=row_tile)
        self.tn, self.tm = plan["tn"], plan["tm"]
        self.n_rows, self.n_cols = plan["n_rows"], plan["n_cols"]
        self.vmem_limit = plan["vmem_limit"]
        # nn.init.uniform_(B): U[0, 1). Stored pre-padded (no per-call pad copy); the
        # finite -1e9 border makes padded rows vanish from the column logsumexp.
        B = jax.random.uniform(key, (K, n, n), dtype=jnp.float32)
        self.B = jnp.full((K, self.n_rows, self.n_cols), _NEG_BIG,
                          param_dtype).at[:, :n, :n].set(B.astype(param_dtype))

    def forward(self, edge_index, num_sample, k, key):
        n, n_rows, n_cols = self.n, self.n_rows, self.n_cols

        Bk_pad = self.B[k]                                   # (n_rows, n_cols), no copy-pad
        Bk_f32 = Bk_pad.astype(jnp.float32)

        # to_dense_adj -> int8 {0,1}, scattered straight into the padded buffer.
        A_pad = jnp.zeros((n_rows, n_cols), jnp.int8).at[
            edge_index[0], edge_index[1]].set(1)

        # Column logsumexp: computed once, shared by sampling and the Pallas kernel.
        lse = _logsumexp(Bk_f32, axis=0, keepdims=True)      # (1, n_cols) f32

        # torch.multinomial(softmax(Bk, dim=0), num_sample): per-ROW sampling without
        # replacement == Gumbel top-k on row scores log P[i, j] = Bk[i, j] - lse[j].
        # TODO(synk): stochastic sampling kept in plain JAX (no Pallas RNG top-k).
        logw = Bk_f32[:n, :n] - lse[:, :n]
        g = jax.random.gumbel(key, (n, n), dtype=jnp.float32)
        _, S = jax.lax.top_k(logw + g, num_sample)           # (n, num_sample) int32

        S_T = jnp.zeros((num_sample, n_cols), jnp.int32).at[:, :n].set(
            S.astype(jnp.int32).T)

        C_pad, logp_cols = graph_editer_pallas(
            A_pad, Bk_pad, S_T, lse, n,
            tn=self.tn, tm=self.tm, vmem_limit=self.vmem_limit)

        C = C_pad[:n, :n]
        log_p = jnp.sum(logp_cols)       # padded columns already zeroed in-kernel

        # dense_to_sparse (variable-length output -> eager jnp.nonzero; not jittable)
        rows, cols = jnp.nonzero(C > 0)
        edge_index_out = jnp.stack([rows, cols], axis=0)
        return edge_index_out, log_p, C, S, A_pad[:n, :n], Bk_f32[:n, :n]


def _reference_check(C, log_p, S, A, Bk, num_sample):
    """Pure-JAX reference of the deterministic path, given the sampled S."""
    n = Bk.shape[0]
    col_idx = jnp.broadcast_to(jnp.arange(n)[:, None], (n, num_sample))
    M = jnp.zeros((n, n), jnp.float32).at[S, col_idx].set(1.0)
    Af = A.astype(jnp.float32)
    C_ref = Af + M * ((1.0 - Af) - Af)
    lse = _logsumexp(Bk, axis=0)
    log_p_ref = jnp.sum(jnp.sum(Bk[S, col_idx], axis=1) - lse)
    assert jnp.allclose(C.astype(jnp.float32), C_ref), "C mismatch vs reference"
    assert jnp.allclose(log_p, log_p_ref, atol=1e-2, rtol=1e-4), "log_p mismatch"


def _run_case(K, n, num_sample, k, seed, *, row_tile=None, param_dtype=jnp.float32):
    key = jax.random.PRNGKey(seed)
    key_param, key_sample = jax.random.split(key)

    # Deterministic small graph: bidirectional ring over n nodes.
    src = jnp.arange(n, dtype=jnp.int32)
    dst = (src + 1) % n
    edge_index = jnp.concatenate(
        [jnp.stack([src, dst], axis=0), jnp.stack([dst, src], axis=0)], axis=1)

    editer = GraphEditer(K, n, key_param, row_tile=row_tile, param_dtype=param_dtype)
    new_edge_index, log_p, C, S, A, Bk = editer.forward(
        edge_index, num_sample, k, key_sample)
    jax.block_until_ready((new_edge_index, log_p, C))
    _reference_check(C, log_p, S, A, Bk, num_sample)


if __name__ == "__main__":
    # Single tile, small lane padding (32 -> 128).
    _run_case(K=3, n=32, num_sample=4, k=1, seed=0)
    # Two 256-wide lane tiles, full-row column tile.
    _run_case(K=2, n=300, num_sample=5, k=0, seed=0)
    # Forced row tiling (3 row tiles): exercises the resident log_p accumulator path.
    _run_case(K=2, n=300, num_sample=5, k=0, seed=1, row_tile=128)
    # bf16 parameter storage (halves the dominant HBM stream on v5e/v6e).
    _run_case(K=2, n=300, num_sample=5, k=0, seed=2, param_dtype=jnp.bfloat16)
    print("KERNEL_OK")
</pallas_src>

<mosaic_0001>
module attributes {stable_mosaic.version = 11 : i64} {
  func.func @_graph_editer_kernel(%arg0: i32, %arg1: i32, %arg2: memref<32x128xi8, #tpu.memory_space<vmem>>, %arg3: memref<32x128xf32, #tpu.memory_space<vmem>>, %arg4: memref<4x128xi32, #tpu.memory_space<vmem>>, %arg5: memref<1x128xf32, #tpu.memory_space<vmem>>, %arg6: memref<32x128xi8, #tpu.memory_space<vmem>>, %arg7: memref<1x128xf32, #tpu.memory_space<vmem>>) attributes {dimension_semantics = [#tpu.dimension_semantics<parallel>, #tpu.dimension_semantics<arbitrary>], iteration_bounds = array<i64: 1, 1>, scalar_prefetch = 0 : i64, scratch_operands = 0 : i64, tpu.core_type = #tpu.core_type<tc>, window_params = [{transform_indices = @transform_0, window_bounds = array<i64: 32, 128>}, {transform_indices = @transform_1, window_bounds = array<i64: 32, 128>}, {transform_indices = @transform_2, window_bounds = array<i64: 4, 128>}, {transform_indices = @transform_3, window_bounds = array<i64: 1, 128>}, {transform_indices = @transform_4, window_bounds = array<i64: 32, 128>}, {transform_indices = @transform_5, window_bounds = array<i64: 1, 128>}]} {
    %c0 = arith.constant 0 : index
    %c0_0 = arith.constant 0 : index
    %0 = vector.load %arg2[%c0, %c0_0] : memref<32x128xi8, #tpu.memory_space<vmem>>, vector<32x128xi8>
    %c0_1 = arith.constant 0 : index
    %c0_2 = arith.constant 0 : index
    %1 = vector.load %arg3[%c0_1, %c0_2] : memref<32x128xf32, #tpu.memory_space<vmem>>, vector<32x128xf32>
    %2 = tpu.iota {dimensions = array<i32: 0>} : vector<32x128xi32>
    %c32_i32 = arith.constant 32 : i32
    %3 = arith.muli %arg1, %c32_i32 : i32
    %4 = vector.broadcast %3 : i32 to vector<32x128xi32>
    %5 = arith.addi %2, %4 : vector<32x128xi32>
    %false = arith.constant false
    %6 = vector.broadcast %false : i1 to vector<32x128xi1>
    %c0_3 = arith.constant 0 : index
    %c0_4 = arith.constant 0 : index
    %7 = vector.load %arg4[%c0_3, %c0_4] : memref<4x128xi32, #tpu.memory_space<vmem>>, vector<1x128xi32>
    %8 = vector.broadcast %7 : vector<1x128xi32> to vector<32x128xi32>
    %9 = arith.cmpi eq, %5, %8 : vector<32x128xi32>
    %10 = arith.ori %6, %9 : vector<32x128xi1>
    %c1 = arith.constant 1 : index
    %c0_5 = arith.constant 0 : index
    %11 = vector.load %arg4[%c1, %c0_5] : memref<4x128xi32, #tpu.memory_space<vmem>>, vector<1x128xi32>
    %12 = vector.broadcast %11 : vector<1x128xi32> to vector<32x128xi32>
    %13 = arith.cmpi eq, %5, %12 : vector<32x128xi32>
    %14 = arith.ori %10, %13 : vector<32x128xi1>
    %c2 = arith.constant 2 : index
    %c0_6 = arith.constant 0 : index
    %15 = vector.load %arg4[%c2, %c0_6] : memref<4x128xi32, #tpu.memory_space<vmem>>, vector<1x128xi32>
    %16 = vector.broadcast %15 : vector<1x128xi32> to vector<32x128xi32>
    %17 = arith.cmpi eq, %5, %16 : vector<32x128xi32>
    %18 = arith.ori %14, %17 : vector<32x128xi1>
    %c3 = arith.constant 3 : index
    %c0_7 = arith.constant 0 : index
    %19 = vector.load %arg4[%c3, %c0_7] : memref<4x128xi32, #tpu.memory_space<vmem>>, vector<1x128xi32>
    %20 = vector.broadcast %19 : vector<1x128xi32> to vector<32x128xi32>
    %21 = arith.cmpi eq, %5, %20 : vector<32x128xi32>
    %22 = arith.ori %18, %21 : vector<32x128xi1>
    %c0_i8 = arith.constant 0 : i8
    %23 = vector.broadcast %c0_i8 : i8 to vector<32x128xi8>
    %24 = arith.cmpi ne, %0, %23 : vector<32x128xi8>
    %25 = arith.xori %24, %22 : vector<32x128xi1>
    %26 = arith.extui %25 : vector<32x128xi1> to vector<32x128xi8>
    %c0_8 = arith.constant 0 : index
    %c0_9 = arith.constant 0 : index
    %27 = vector.load %arg6[%c0_8, %c0_9] : memref<32x128xi8, #tpu.memory_space<vmem>>, vector<32x128xi8>
    tpu.vector_store %arg6[%c0_8, %c0_9], %26 {strides = array<i32>} : memref<32x128xi8, #tpu.memory_space<vmem>>, vector<32x128xi8>,
    %cst = arith.constant 0.000000e+00 : f32
    %28 = vector.broadcast %cst : f32 to vector<32x128xf32>
    %29 = arith.select %22, %1, %28 : vector<32x128xi1>, vector<32x128xf32>
    %cst_10 = arith.constant dense<0.000000e+00> : vector<128xf32>
    %30 = vector.multi_reduction <add>, %29, %cst_10 [0] : vector<32x128xf32> to vector<128xf32>
    %31 = vector.shape_cast %30 : vector<128xf32> to vector<1x128xf32>
    %32 = tpu.iota {dimensions = array<i32: 1>} : vector<1x128xi32>
    %c128_i32 = arith.constant 128 : i32
    %33 = arith.muli %arg0, %c128_i32 : i32
    %34 = vector.broadcast %33 : i32 to vector<1x128xi32>
    %35 = arith.addi %32, %34 : vector<1x128xi32>
    %c32_i32_11 = arith.constant 32 : i32
    %36 = vector.broadcast %c32_i32_11 : i32 to vector<1x128xi32>
    %37 = arith.cmpi slt, %35, %36 : vector<1x128xi32>
    %38 = arith.extui %37 : vector<1x128xi1> to vector<1x128xi32>
    %39 = arith.sitofp %38 : vector<1x128xi32> to vector<1x128xf32>
    %c0_i32 = arith.constant 0 : i32
    %40 = arith.cmpi eq, %arg1, %c0_i32 : i32
    %41 = arith.extui %40 : i1 to i32
    %c0_i32_12 = arith.constant 0 : i32
    %42 = arith.cmpi ne, %41, %c0_i32_12 : i32
    scf.if %42 {
      %c0_17 = arith.constant 0 : index
      %c0_18 = arith.constant 0 : index
      %47 = vector.load %arg5[%c0_17, %c0_18] : memref<1x128xf32, #tpu.memory_space<vmem>>, vector<1x128xf32>
      %cst_19 = arith.constant 0.000000e+00 : f32
      %48 = vector.broadcast %cst_19 : f32 to vector<1x128xf32>
      %49 = arith.subf %48, %47 : vector<1x128xf32>
      %50 = arith.mulf %49, %39 : vector<1x128xf32>
      %c0_20 = arith.constant 0 : index
      %c0_21 = arith.constant 0 : index
      %51 = vector.load %arg7[%c0_20, %c0_21] : memref<1x128xf32, #tpu.memory_space<vmem>>, vector<1x128xf32>
      tpu.vector_store %arg7[%c0_20, %c0_21], %50 {strides = array<i32>} : memref<1x128xf32, #tpu.memory_space<vmem>>, vector<1x128xf32>,
    } else {
    }
    %c0_13 = arith.constant 0 : index
    %c0_14 = arith.constant 0 : index
    %43 = vector.load %arg7[%c0_13, %c0_14] : memref<1x128xf32, #tpu.memory_space<vmem>>, vector<1x128xf32>
    %44 = arith.mulf %31, %39 : vector<1x128xf32>
    %45 = arith.addf %43, %44 : vector<1x128xf32>
    %c0_15 = arith.constant 0 : index
    %c0_16 = arith.constant 0 : index
    %46 = vector.load %arg7[%c0_15, %c0_16] : memref<1x128xf32, #tpu.memory_space<vmem>>, vector<1x128xf32>
    tpu.vector_store %arg7[%c0_15, %c0_16], %45 {strides = array<i32>} : memref<1x128xf32, #tpu.memory_space<vmem>>, vector<1x128xf32>,
    return
  }
  func.func @transform_0(%arg0: i32, %arg1: i32) -> (i32, i32) {
    %c0_i32 = arith.constant 0 : i32
    return %arg1, %arg0 : i32, i32
  }
  func.func @transform_1(%arg0: i32, %arg1: i32) -> (i32, i32) {
    %c0_i32 = arith.constant 0 : i32
    return %arg1, %arg0 : i32, i32
  }
  func.func @transform_2(%arg0: i32, %arg1: i32) -> (i32, i32) {
    %c0_i32 = arith.constant 0 : i32
    %c0_i32_0 = arith.constant 0 : i32
    return %c0_i32, %arg0 : i32, i32
  }
  func.func @transform_3(%arg0: i32, %arg1: i32) -> (i32, i32) {
    %c0_i32 = arith.constant 0 : i32
    %c0_i32_0 = arith.constant 0 : i32
    return %c0_i32, %arg0 : i32, i32
  }
  func.func @transform_4(%arg0: i32, %arg1: i32) -> (i32, i32) {
    %c0_i32 = arith.constant 0 : i32
    return %arg1, %arg0 : i32, i32
  }
  func.func @transform_5(%arg0: i32, %arg1: i32) -> (i32, i32) {
    %c0_i32 = arith.constant 0 : i32
    %c0_i32_0 = arith.constant 0 : i32
    return %c0_i32, %arg0 : i32, i32
  }
}

</mosaic_0001>

<llo_original>
// kernel: tpu_custom_call.1
$region0: #{tpu_custom_call.1}
  #allocation0 [shape = 'u32[]', space=smem, size = 0x4, offset = 0x4, fixed_abs, tag = 'smem constant byte address 0x4 - core index']
  #allocation1 [shape = 'u32[72,128]{1,0:T(1,128)}', space=vmem, size = 0x9000, scoped, tag = 'internal scratch']
  %s0 = inlined_call_operand.hbm [shape: s8[32,128], index: 0, kind: input, shape index: {}]
  %s1 = inlined_call_operand.hbm [shape: f32[32,128], index: 1, kind: input, shape index: {}]
  %s2 = inlined_call_operand.hbm [shape: s32[4,128], index: 2, kind: input, shape index: {}]
  %s3 = inlined_call_operand.vmem [shape: f32[1,128], index: 3, kind: input, shape index: {}]
  %s4 = inlined_call_operand.hbm [shape: s8[32,128], index: 4, kind: output, shape index: {0}]
  %s5 = inlined_call_operand.hbm [shape: f32[1,128], index: 5, kind: output, shape index: {1}]
  %6 = xla_tuple %s4, %s5
  %s7 = sld [smem:[#allocation0]]
  $region50: #{tpu_custom_call.1} parent=0
    _
  %s9 = ssub.s32 1, %s7
  %s10 = scalar_select 0, %s9, %s7
  $region1: #{tpu_custom_call.1} parent=0
    #allocation2 [shape = 'u8[4096]{0}', space=vmem, size = 0x1000, scoped, tag = 'input window, operand 0, single buffered']
    #allocation3 [shape = 's32[1]{0}', space=sflag, size = 0x4, scoped, tag = 'scoped memory for tpu_custom_call.1']
    #allocation4 [shape = 's32[1]{0}', space=sflag, size = 0x4, scoped, tag = 'scoped memory for tpu_custom_call.1']
    #allocation5 [shape = 'u8[16384]{0}', space=vmem, size = 0x4000, scoped, tag = 'input window, operand 1, single buffered']
    #allocation6 [shape = 's32[1]{0}', space=sflag, size = 0x4, scoped, tag = 'scoped memory for tpu_custom_call.1']
    #allocation7 [shape = 'u8[2048]{0}', space=vmem, size = 0x800, scoped, tag = 'input window, operand 2, single buffered']
    #allocation8 [shape = 'u8[4096]{0}', space=vmem, size = 0x1000, scoped, tag = 'output window, operand 0, single buffered']
    #allocation9 [shape = 'u8[512]{0}', space=vmem, size = 0x400, scoped, tag = 'output window, operand 1, single buffered']
    #allocation10 [shape = 's32[1]{0}', space=sflag, size = 0x4, scoped, tag = 'scoped memory for tpu_custom_call.1']
    %11 = vsyncpa [#allocation3], 0
    %12 = vsyncpa [#allocation6], 0
    %13 = vsyncpa [#allocation4], 0
    %14 = vsyncpa [#allocation10], 0
    // Predicated region
    $region2: #{tpu_custom_call.1} parent=1 // pred_check
      _
    $region3: #{tpu_custom_call.1} parent=1 // pred_check_branch
      %16 = sbr.rel (0) target = $region5
    $region4: #{tpu_custom_call.1} parent=1 // pred_region
      %18 = vsyncadd [#allocation3], 0
      %s20 = sshll.u32 %s0, 4
      %s21 = int_to_ptr.hbm [resolvable:$true] %s20
      %s22 = sshll.u32 [#allocation2], 4
      %s23 = int_to_ptr.vmem [resolvable:$true] %s22
      %25 = dma.hbm_to_vmem [thread:$0]  %s21, 128, %s23, [#allocation3]
    $region5: #{tpu_custom_call.1} parent=1 // pred_fallthru
      _
    // Predicated region
    $region6: #{tpu_custom_call.1} parent=1 // pred_check
      _
    $region7: #{tpu_custom_call.1} parent=1 // pred_check_branch
      %27 = sbr.rel (0) target = $region9
    $region8: #{tpu_custom_call.1} parent=1 // pred_region
      %29 = vsyncadd [#allocation6], 0
      %s30 = sshll.u32 %s1, 4
      %s31 = int_to_ptr.hbm [resolvable:$true] %s30
      %s32 = sshll.u32 [#allocation5], 4
      %s33 = int_to_ptr.vmem [resolvable:$true] %s32
      %38 = dma.hbm_to_vmem [thread:$0]  %s31, 512, %s33, [#allocation6], 128, 128, 8
    $region9: #{tpu_custom_call.1} parent=1 // pred_fallthru
      _
    // Predicated region
    $region10: #{tpu_custom_call.1} parent=1 // pred_check
      _
    $region11: #{tpu_custom_call.1} parent=1 // pred_check_branch
      %40 = sbr.rel (0) target = $region13
    $region12: #{tpu_custom_call.1} parent=1 // pred_region
      %42 = vsyncadd [#allocation6], 0
      %s44 = sshll.u32 %s2, 4
      %s45 = int_to_ptr.hbm [resolvable:$true] %s44
      %s46 = sshll.u32 [#allocation7], 4
      %s47 = int_to_ptr.vmem [resolvable:$true] %s46
      %49 = dma.hbm_to_vmem [thread:$0]  %s45, 64, %s47, [#allocation6]
    $region13: #{tpu_custom_call.1} parent=1 // pred_fallthru
      _
    // Predicated region
    $region14: #{tpu_custom_call.1} parent=1 // pred_check
      _
    $region15: #{tpu_custom_call.1} parent=1 // pred_check_branch
      %51 = sbr.rel (0) target = $region17
    $region16: #{tpu_custom_call.1} parent=1 // pred_region
      _
    $region17: #{tpu_custom_call.1} parent=1 // pred_fallthru
      _
    // Predicated region
    $region18: #{tpu_custom_call.1} parent=1 // pred_check
      _
    $region19: #{tpu_custom_call.1} parent=1 // pred_check_branch
      %53 = sbr.rel (0) target = $region21
    $region20: #{tpu_custom_call.1} parent=1 // pred_region
      %55 = dma.done [#allocation3], 128
    $region21: #{tpu_custom_call.1} parent=1 // pred_fallthru
      _
    // Predicated region
    $region22: #{tpu_custom_call.1} parent=1 // pred_check
      _
    $region23: #{tpu_custom_call.1} parent=1 // pred_check_branch
      %57 = sbr.rel (0) target = $region25
    $region24: #{tpu_custom_call.1} parent=1 // pred_region
      %59 = dma.done [#allocation6], 512
    $region25: #{tpu_custom_call.1} parent=1 // pred_fallthru
      _
    // Predicated region
    $region26: #{tpu_custom_call.1} parent=1 // pred_check
      _
    $region27: #{tpu_custom_call.1} parent=1 // pred_check_branch
      %61 = sbr.rel (0) target = $region29
    $region28: #{tpu_custom_call.1} parent=1 // pred_region
      %63 = dma.done [#allocation6], 64
    $region29: #{tpu_custom_call.1} parent=1 // pred_fallthru
      _
    %v66 = vld [vmem:[#allocation2] sm:$0xff]
    %v67 = vld [vmem:[#allocation5] sm:$0xff]
    %v68 = vld [vmem:[#allocation5 + $0x8] sm:$0xff]
    %v69 = vld [vmem:[#allocation5 + $0x10] sm:$0xff]
    %v70 = vld [vmem:[#allocation5 + $0x18] sm:$0xff]
    %v71 = vlaneseq
    %v72 = vshrl.u32 %v71, 7
    %v73 = vadd.s32 %v72, 8
    %v74 = vadd.s32 %v72, 16
    %v75 = vadd.s32 %v72, 24
    %s76 = smul.u32 0, 32
    %v77 = vstv %s76
    %v78 = vadd.s32 %v72, %v77
    %v79 = vadd.s32 %v73, %v77
    %v80 = vadd.s32 %v74, %v77
    %v81 = vadd.s32 %v75, %v77
    %v82 = vld [vmem:[#allocation7] sm:$0x1]
    %v83 = vperm.slane %v82, 0
    %vm84 = vcmp.eq.s32.totalorder %v78, %v83
    %vm85 = vcmp.eq.s32.totalorder %v79, %v83
    %vm86 = vcmp.eq.s32.totalorder %v80, %v83
    %vm87 = vcmp.eq.s32.totalorder %v81, %v83
    %v88 = vld [vmem:[#allocation7 + $0x1] sm:$0x1]
    %v89 = vperm.slane %v88, 0
    %vm90 = vcmp.eq.s32.totalorder %v78, %v89
    %vm91 = vcmp.eq.s32.totalorder %v79, %v89
    %vm92 = vcmp.eq.s32.totalorder %v80, %v89
    %vm93 = vcmp.eq.s32.totalorder %v81, %v89
    %vm94 = vmor %vm84, %vm90
    %vm95 = vmor %vm85, %vm91
    %vm96 = vmor %vm86, %vm92
    %vm97 = vmor %vm87, %vm93
    %v98 = vld [vmem:[#allocation7 + $0x2] sm:$0x1]
    %v99 = vperm.slane %v98, 0
    %vm100 = vcmp.eq.s32.totalorder %v78, %v99
    %vm101 = vcmp.eq.s32.totalorder %v79, %v99
    %vm102 = vcmp.eq.s32.totalorder %v80, %v99
    %vm103 = vcmp.eq.s32.totalorder %v81, %v99
    %vm104 = vmor %vm94, %vm100
    %vm105 = vmor %vm95, %vm101
    %vm106 = vmor %vm96, %vm102
    %vm107 = vmor %vm97, %vm103
    %v108 = vld [vmem:[#allocation7 + $0x3] sm:$0x1]
    %v109 = vperm.slane %v108, 0
    %vm110 = vcmp.eq.s32.totalorder %v78, %v109
    %vm111 = vcmp.eq.s32.totalorder %v79, %v109
    %vm112 = vcmp.eq.s32.totalorder %v80, %v109
    %vm113 = vcmp.eq.s32.totalorder %v81, %v109
    %vm114 = vmor %vm104, %vm110
    %vm115 = vmor %vm105, %vm111
    %vm116 = vmor %vm106, %vm112
    %vm117 = vmor %vm107, %vm113
    %vm118 = vnez %v66
    %vm119 = vmpackc.low %vm115, %vm114
    %vm120 = vmpackc.low %vm117, %vm116
    %v121 = vsel %vm119, 16711935, 0
    %v122 = vsel %vm120, 16711935, 0
    %v123 = vpack.c.b8 %v122, %v121
    %vm124 = vnez %v123
    %vm125 = vmxor %vm118, %vm124
    %v126 = vsel %vm125, 16843009, 0
    %127 = vst [vmem:[#allocation8] sm:$0xff] %v126
    %v128 = vsel %vm114, %v67, 0.0
    %v129 = vsel %vm115, %v68, 0.0
    %v130 = vsel %vm116, %v69, 0.0
    %v131 = vsel %vm117, %v70, 0.0
    %v132 = vadd.f32 %v128, %v129
    %v133 = vadd.f32 %v132, %v130
    %v134 = vadd.f32 %v133, %v131
    %v135 = vrot.slane %v134, 4
    %v136 = vadd.f32 %v134, %v135
    %v137 = vrot.slane %v136, 2
    %v138 = vadd.f32 %v136, %v137
    %v139 = vrot.slane %v138, 1
    %v140 = vadd.f32 %v138, %v139
    %v141 = vlaneseq
    %v142 = vand.u32 %v141, 127
    %s143 = smul.u32 0, 128
    %v144 = vstv %s143
    %v145 = vadd.s32 %v142, %v144
    %vm146 = vcmp.lt.s32.totalorder %v145, 32
    %v147 = vsel %vm146, 1, 0
    %v148 = vcvt.s32.f32 %v147
    %p149 = scmp.eq.s32.totalorder 0, 0
    // Predicated region
    $region30: #{tpu_custom_call.1} parent=1 // pred_check
      %p150 = pneg %p149
    $region31: #{tpu_custom_call.1} parent=1 // pred_check_branch
      %152 = sbr.rel (%p150) target = $region33
    $region32: #{tpu_custom_call.1} parent=1 // pred_region
      %v153 = vld [vmem:[%s3] sm:$0x1]
      %v154 = vsub.f32 0.0, %v153
      %v155 = vmul.f32 %v154, %v148
      %156 = vst [vmem:[#allocation9] sm:$0x1] %v155
    $region33: #{tpu_custom_call.1} parent=1 // pred_fallthru
      _
    %v157 = vld [vmem:[#allocation9] sm:$0x1]
    %v158 = vmul.f32 %v140, %v148
    %v159 = vadd.f32 %v157, %v158
    %160 = vst [vmem:[#allocation9] sm:$0x1] %v159
    // Predicated region
    $region34: #{tpu_custom_call.1} parent=1 // pred_check
      _
    $region35: #{tpu_custom_call.1} parent=1 // pred_check_branch
      %162 = sbr.rel (0) target = $region37
    $region36: #{tpu_custom_call.1} parent=1 // pred_region
      %164 = vsyncadd [#allocation4], 0
      %s166 = sshll.u32 [#allocation8], 4
      %s167 = int_to_ptr.vmem [resolvable:$true] %s166
      %s168 = sshll.u32 %s4, 4
      %s169 = int_to_ptr.hbm [resolvable:$true] %s168
      %171 = dma.vmem_to_hbm [thread:$0]  %s167, 128, %s169, [#allocation4]
    $region37: #{tpu_custom_call.1} parent=1 // pred_fallthru
      _
    // Predicated region
    $region38: #{tpu_custom_call.1} parent=1 // pred_check
      _
    $region39: #{tpu_custom_call.1} parent=1 // pred_check_branch
      %173 = sbr.rel (0) target = $region41
    $region40: #{tpu_custom_call.1} parent=1 // pred_region
      %175 = vsyncadd [#allocation10], 0
      %s177 = sshll.u32 [#allocation9], 4
      %s178 = int_to_ptr.vmem [resolvable:$true] %s177
      %s179 = sshll.u32 %s5, 4
      %s180 = int_to_ptr.hbm [resolvable:$true] %s179
      %182 = dma.vmem_to_hbm [thread:$0]  %s178, 16, %s180, [#allocation10]
    $region41: #{tpu_custom_call.1} parent=1 // pred_fallthru
      _
    // Predicated region
    $region42: #{tpu_custom_call.1} parent=1 // pred_check
      _
    $region43: #{tpu_custom_call.1} parent=1 // pred_check_branch
      %184 = sbr.rel (0) target = $region45
    $region44: #{tpu_custom_call.1} parent=1 // pred_region
      %186 = dma.done [#allocation4], 128
    $region45: #{tpu_custom_call.1} parent=1 // pred_fallthru
      _
    // Predicated region
    $region46: #{tpu_custom_call.1} parent=1 // pred_check
      _
    $region47: #{tpu_custom_call.1} parent=1 // pred_check_branch
      %188 = sbr.rel (0) target = $region49
    $region48: #{tpu_custom_call.1} parent=1 // pred_region
      %190 = dma.done [#allocation10], 16
    $region49: #{tpu_custom_call.1} parent=1 // pred_fallthru
      _
    %191 = vsyncpa [#allocation3], 1
    %192 = vsyncpa [#allocation6], 1
    %193 = vsyncpa [#allocation4], 1
    %194 = vsyncpa [#allocation10], 1

</llo_original>
